<compile_context>
chip_gen: v6e
topology: v6e:2x2x1
jax: 0.10.0
libtpu: 0.0.40
codegen_flags: <defaults>
</compile_context>

<pallas_src>
import jax
import jax.numpy as jnp
from jax.experimental import pallas as pl
from jax.experimental.pallas import tpu as pltpu


def _mul_add_kernel(x_ref, o_ref):
    # elementwise hot path: y = x * 2 + 1 (constants in the input dtype so
    # integer inputs keep integer semantics)
    x = x_ref[...]
    two = jnp.asarray(2, dtype=x.dtype)
    one = jnp.asarray(1, dtype=x.dtype)
    o_ref[...] = x * two + one


# Tiling parameters (streaming, HBM-bandwidth bound):
_TARGET_BLOCK_BYTES = 2 * 1024 * 1024   # ~2 MiB per buffer -> 8 MiB double-buffered
_SMALL_BYTES = 512 * 1024               # <= 512 KiB: single block, no grid
_COL_CANDIDATES = (2048, 1024, 512, 256, 128)  # lane-dense widths (mult. of 128)


def _pick_cols(n):
    """Widest lane-dense divisor of n, preferring ones that give rows >= 8."""
    fallback = None
    for c in _COL_CANDIDATES:
        if n % c == 0:
            if fallback is None:
                fallback = c
            if n // c >= 8:
                return c
    return fallback  # n % 128 == 0 guarantees this is not None


def _xla_fallback(x):
    # Plain XLA elementwise: fuses into a single roofline op, zero extra copies.
    two = jnp.asarray(2, dtype=x.dtype)
    one = jnp.asarray(1, dtype=x.dtype)
    return x * two + one


def pt_module_forward(x):
    """Computes torch.mul(x, 2) followed by +1 on every batch row (== x*2+1)."""
    orig_shape = x.shape
    dtype = x.dtype
    n = x.size

    # Empty tensor: nothing to do.
    if n == 0:
        return x

    # Shapes whose flat size is not a multiple of 128 would require a pad +
    # concat + tail slice (2 extra full-tensor HBM copies) around a purely
    # bandwidth-bound kernel -> plain XLA is strictly faster there.
    if n % 128 != 0:
        return _xla_fallback(x)

    itemsize = jnp.dtype(dtype).itemsize
    total_bytes = n * itemsize

    cols = _pick_cols(n)
    rows = n // cols
    x2d = jnp.reshape(x, (rows, cols))

    # ---- small path: whole array as a single full block (no grid) -----------
    if total_bytes <= _SMALL_BYTES or rows < 16:
        out2d = pl.pallas_call(
            _mul_add_kernel,
            out_shape=jax.ShapeDtypeStruct((rows, cols), dtype),
        )(x2d)
        return jnp.reshape(out2d, orig_shape)

    # ---- large path: lane-dense blocks tiled along rows, >= 2 grid steps ----
    # Target ~2 MiB per buffer; block_rows must be a multiple of 8.
    target_rows = max(8, (_TARGET_BLOCK_BYTES // (cols * itemsize)) // 8 * 8)
    # Cap so there are at least 2 grid steps (v7x megacore + DMA overlap).
    half_rows = ((pl.cdiv(rows, 2) + 7) // 8) * 8
    block_rows = min(target_rows, half_rows)
    grid = (pl.cdiv(rows, block_rows),)  # ragged last block handled by Pallas

    out2d = pl.pallas_call(
        _mul_add_kernel,
        out_shape=jax.ShapeDtypeStruct((rows, cols), dtype),
        grid_spec=pltpu.PrefetchScalarGridSpec(
            num_scalar_prefetch=0,
            grid=grid,
            in_specs=[pl.BlockSpec((block_rows, cols), lambda i: (i, 0))],
            out_specs=pl.BlockSpec((block_rows, cols), lambda i: (i, 0)),
        ),
        compiler_params=pltpu.CompilerParams(
            # rows axis is independent -> shard across v7x's 2 TensorCores
            dimension_semantics=("parallel",)),
    )(x2d)

    return jnp.reshape(out2d, orig_shape)


if __name__ == "__main__":
    key = jax.random.PRNGKey(0)
    x = jax.random.normal(key, (2, 4, 16, 16), dtype=jnp.float32)

    y = pt_module_forward(x)
    y = jax.block_until_ready(y)

    # reference check
    y_ref = x * 2.0 + 1.0
    assert y.shape == x.shape and y.dtype == x.dtype
    assert jnp.allclose(y, y_ref, atol=1e-6), "mismatch vs reference"

    print("KERNEL_OK")
</pallas_src>

<mosaic_0001>
module attributes {stable_mosaic.version = 11 : i64} {
  func.func @_mul_add_kernel(%arg0: memref<8x256xf32, #tpu.memory_space<vmem>>, %arg1: memref<8x256xf32, #tpu.memory_space<vmem>>) attributes {dimension_semantics = [], scalar_prefetch = 0 : i64, scratch_operands = 0 : i64, tpu.core_type = #tpu.core_type<tc>} {
    %c0 = arith.constant 0 : index
    %c0_0 = arith.constant 0 : index
    %0 = vector.load %arg0[%c0, %c0_0] : memref<8x256xf32, #tpu.memory_space<vmem>>, vector<8x256xf32>
    %cst = arith.constant 2.000000e+00 : f32
    %1 = vector.broadcast %cst : f32 to vector<8x256xf32>
    %2 = arith.mulf %0, %1 : vector<8x256xf32>
    %cst_1 = arith.constant 1.000000e+00 : f32
    %3 = vector.broadcast %cst_1 : f32 to vector<8x256xf32>
    %4 = arith.addf %2, %3 : vector<8x256xf32>
    %c0_2 = arith.constant 0 : index
    %c0_3 = arith.constant 0 : index
    %5 = vector.load %arg1[%c0_2, %c0_3] : memref<8x256xf32, #tpu.memory_space<vmem>>, vector<8x256xf32>
    tpu.vector_store %arg1[%c0_2, %c0_3], %4 {strides = array<i32>} : memref<8x256xf32, #tpu.memory_space<vmem>>, vector<8x256xf32>,
    return
  }
}

</mosaic_0001>

<llo_original>
// kernel: tpu_custom_call.1
$region0: #{tpu_custom_call.1}
  #allocation0 [shape = 'u32[]', space=smem, size = 0x4, offset = 0x4, fixed_abs, tag = 'smem constant byte address 0x4 - core index']
  #allocation1 [shape = 'u32[144,128]{1,0:T(1,128)}', space=vmem, size = 0x12000, scoped, tag = 'internal scratch']
  %s0 = inlined_call_operand.hbm [shape: f32[8,256], index: 0, kind: input, shape index: {}]
  %s1 = inlined_call_operand.hbm [shape: f32[8,256], index: 1, kind: output, shape index: {}]
  %s2 = sld [smem:[#allocation0]]
  $region18: #{tpu_custom_call.1} parent=0
    _
  %s4 = ssub.s32 1, %s2
  %s5 = scalar_select 0, %s4, %s2
  $region1: #{tpu_custom_call.1} parent=0
    #allocation2 [shape = 'u8[8192]{0}', space=vmem, size = 0x2000, scoped, tag = 'input window, operand 0, single buffered']
    #allocation3 [shape = 's32[1]{0}', space=sflag, size = 0x4, scoped, tag = 'scoped memory for tpu_custom_call.1']
    #allocation4 [shape = 's32[1]{0}', space=sflag, size = 0x4, scoped, tag = 'scoped memory for tpu_custom_call.1']
    #allocation5 [shape = 'u8[8192]{0}', space=vmem, size = 0x2000, scoped, tag = 'output window, operand 0, single buffered']
    %6 = vsyncpa [#allocation3], 0
    %7 = vsyncpa [#allocation4], 0
    // Predicated region
    $region2: #{tpu_custom_call.1} parent=1 // pred_check
      _
    $region3: #{tpu_custom_call.1} parent=1 // pred_check_branch
      %9 = sbr.rel (0) target = $region5
    $region4: #{tpu_custom_call.1} parent=1 // pred_region
      %s11 = ssub.s32 256, 256
      %12 = vsyncadd [#allocation3], %s11
      %s14 = sshll.u32 [#allocation2], 4
      %s15 = int_to_ptr.vmem [resolvable:$true] %s14
      %17 = dma.hbm_to_vmem [thread:$0]  %s0, 256, %s15, [#allocation3]
    $region5: #{tpu_custom_call.1} parent=1 // pred_fallthru
      _
    // Predicated region
    $region6: #{tpu_custom_call.1} parent=1 // pred_check
      _
    $region7: #{tpu_custom_call.1} parent=1 // pred_check_branch
      %19 = sbr.rel (0) target = $region9
    $region8: #{tpu_custom_call.1} parent=1 // pred_region
      %20 = dma.done [#allocation3], 256
    $region9: #{tpu_custom_call.1} parent=1 // pred_fallthru
      _
    %v21 = vld [vmem:[#allocation2] sm:$0xff]
    %v22 = vld [vmem:[#allocation2 + $0x8] sm:$0xff]
    %v23 = vmul.f32 %v21, 2.0
    %v24 = vmul.f32 %v22, 2.0
    %v25 = vadd.f32 %v23, 1.0
    %v26 = vadd.f32 %v24, 1.0
    %27 = vst [vmem:[#allocation5] sm:$0xff] %v25
    %28 = vst [vmem:[#allocation5 + $0x8] sm:$0xff] %v26
    // Predicated region
    $region10: #{tpu_custom_call.1} parent=1 // pred_check
      _
    $region11: #{tpu_custom_call.1} parent=1 // pred_check_branch
      %30 = sbr.rel (0) target = $region13
    $region12: #{tpu_custom_call.1} parent=1 // pred_region
      %s32 = ssub.s32 256, 256
      %33 = vsyncadd [#allocation4], %s32
      %s35 = sshll.u32 [#allocation5], 4
      %s36 = int_to_ptr.vmem [resolvable:$true] %s35
      %38 = dma.vmem_to_hbm [thread:$0]  %s36, 256, %s1, [#allocation4]
    $region13: #{tpu_custom_call.1} parent=1 // pred_fallthru
      _
    // Predicated region
    $region14: #{tpu_custom_call.1} parent=1 // pred_check
      _
    $region15: #{tpu_custom_call.1} parent=1 // pred_check_branch
      %40 = sbr.rel (0) target = $region17
    $region16: #{tpu_custom_call.1} parent=1 // pred_region
      %41 = dma.done [#allocation4], 256
    $region17: #{tpu_custom_call.1} parent=1 // pred_fallthru
      _
    %42 = vsyncpa [#allocation3], 1
    %43 = vsyncpa [#allocation4], 1

</llo_original>
